<compile_context>
chip_gen: v6e
topology: v6e:2x2x1
jax: 0.10.0
libtpu: 0.0.40
codegen_flags: <defaults>
</compile_context>

<pallas_src>
import jax
import jax.numpy as jnp
from jax.experimental import pallas as pl
from jax.experimental.pallas import tpu as pltpu

LANGS = ("en", "fr", "de")            # keys of the ModuleDict
BATCH, HIDDEN, OUT = 256, 128, 256    # lane-aligned Linear-head shapes

TM = 128    # row (M) tile; 2 parallel row tiles -> feeds both v7x TCs


def _lang_linear_kernel(lang_ref, x_ref, w_ref, b_ref, o_ref):
    """One (TM, OUT) output tile of y = x @ W[lang] + b[lang].

    lang_ref : SMEM (1,) int32     -- scalar-prefetched language index;
                                      consumed by the BlockSpec index_maps.
    x_ref    : VMEM (TM, HIDDEN)   -- activation row tile (f32)
    w_ref    : VMEM (HIDDEN, OUT)  -- selected language's weights (bf16,
                                      already (HIDDEN, OUT) -> no transpose)
    b_ref    : VMEM (1, OUT)       -- selected language's bias row (f32)
    o_ref    : VMEM (TM, OUT)      -- output tile (f32)
    """
    del lang_ref  # dispatch already happened in the index_maps
    x = x_ref[...].astype(jnp.bfloat16)          # bf16 operands -> native MXU
    acc = jnp.dot(x, w_ref[...], preferred_element_type=jnp.float32)
    o_ref[...] = (acc + b_ref[...]).astype(o_ref.dtype)


@jax.jit
def _dispatch_linear(lang_idx, x, w_stack_t, b_stack3):
    """y = x @ w_stack_t[lang] + b_stack3[lang]; lang selected in-kernel."""
    batch, hidden = x.shape
    num_langs, _, out_f = w_stack_t.shape

    grid = (pl.cdiv(batch, TM),)

    cost = pl.CostEstimate(
        flops=2 * batch * hidden * out_f,
        transcendentals=0,
        bytes_accessed=(batch * hidden * 4      # x (f32)
                        + hidden * out_f * 2    # one language's weights (bf16)
                        + out_f * 4             # one bias row (f32)
                        + batch * out_f * 4),   # y (f32)
    )

    return pl.pallas_call(
        _lang_linear_kernel,
        out_shape=jax.ShapeDtypeStruct((batch, out_f), x.dtype),
        grid_spec=pltpu.PrefetchScalarGridSpec(
            num_scalar_prefetch=1,
            grid=grid,
            in_specs=[
                # x: row tile i, full HIDDEN (K axis collapsed)
                pl.BlockSpec((TM, hidden), lambda i, lang_r: (i, 0)),
                # W: language axis squeezed; grid-invariant -> DMA'd once
                pl.BlockSpec((pl.Squeezed(), hidden, out_f),
                             lambda i, lang_r: (lang_r[0], 0, 0)),
                # b: one (1, OUT) bias row of the selected language
                pl.BlockSpec((pl.Squeezed(), 1, out_f),
                             lambda i, lang_r: (lang_r[0], 0, 0)),
            ],
            out_specs=pl.BlockSpec((TM, out_f), lambda i, lang_r: (i, 0)),
        ),
        compiler_params=pltpu.CompilerParams(
            dimension_semantics=("parallel",)),
        cost_estimate=cost,
    )(lang_idx, x, w_stack_t, b_stack3)


def multilingual_forward(x, w_stack_t, b_stack, *, lang):
    """Equivalent of MultilingualModule.forward(x, lang=lang) with Linear heads."""
    # Mirrors: assert lang in self.module_dict
    assert lang in LANGS, "error '{}' no module by this name".format(lang)
    # Traced index -> one compiled executable serves every language.
    lang_idx = jnp.asarray([LANGS.index(lang)], dtype=jnp.int32)

    batch, hidden = x.shape
    num_langs, w_hidden, out_f = w_stack_t.shape
    # Lane-alignment guards (full-extent blocks on these axes -> no silent
    # tail-drop; this just documents the supported shapes).
    assert hidden == w_hidden
    assert hidden % 128 == 0 and out_f % 128 == 0, "HIDDEN/OUT must be lane-aligned"

    # Bias as (L, 1, OUT): the (1, OUT) block matches the full trailing dims.
    b3 = b_stack.reshape(num_langs, 1, out_f)

    # Pad rows to the tile size so the grid divides evenly; slice after.
    pad = (-batch) % TM
    if pad:
        x = jnp.pad(x, ((0, pad), (0, 0)))
    y = _dispatch_linear(lang_idx, x, w_stack_t, b3)
    return y[:batch] if pad else y


def _init_params():
    """Deterministic per-language Linear params (PyTorch-style uniform init).

    Weights are transposed ONCE on the host to (L, HIDDEN, OUT) and stored as
    bf16 so the kernel feeds the MXU directly at native rate.
    """
    bound = 1.0 / (HIDDEN ** 0.5)
    ws, bs = [], []
    for li, _ in enumerate(LANGS):
        kw, kb = jax.random.split(jax.random.PRNGKey(100 + li))
        w = jax.random.uniform(kw, (OUT, HIDDEN), jnp.float32,
                               minval=-bound, maxval=bound)   # nn.Linear layout
        ws.append(w.T.astype(jnp.bfloat16))                   # -> (HIDDEN, OUT) bf16
        bs.append(jax.random.uniform(kb, (OUT,), jnp.float32,
                                     minval=-bound, maxval=bound))
    return jnp.stack(ws, axis=0), jnp.stack(bs, axis=0)  # (L,HIDDEN,OUT),(L,OUT)


if __name__ == "__main__":
    key = jax.random.PRNGKey(0)
    x = jax.random.normal(key, (BATCH, HIDDEN), jnp.float32)
    w_stack_t, b_stack = _init_params()

    # Two languages exercise the same executable (lang is a traced argument).
    outs = {}
    for lang in ("fr", "en"):
        outs[lang] = jax.block_until_ready(
            multilingual_forward(x, w_stack_t, b_stack, lang=lang))

    # Pure-JAX reference of the dispatched sub-module (same bf16 operand path).
    for lang, out in outs.items():
        idx = LANGS.index(lang)
        ref = jnp.dot(x.astype(jnp.bfloat16), w_stack_t[idx],
                      preferred_element_type=jnp.float32) + b_stack[idx]
        assert out.shape == (BATCH, OUT)
        assert jnp.allclose(out, ref, atol=1e-2, rtol=1e-2), \
            "mismatch vs reference for lang '{}'".format(lang)

    print("KERNEL_OK")
</pallas_src>

<mosaic_0001>
module attributes {stable_mosaic.version = 11 : i64} {
  func.func @_lang_linear_kernel(%arg0: i32, %arg1: memref<1xi32, #tpu.memory_space<smem>>, %arg2: memref<128x128xf32, #tpu.memory_space<vmem>>, %arg3: memref<1x128x256xbf16, #tpu.memory_space<vmem>>, %arg4: memref<1x1x256xf32, #tpu.memory_space<vmem>>, %arg5: memref<128x256xf32, #tpu.memory_space<vmem>>) attributes {dimension_semantics = [#tpu.dimension_semantics<parallel>], iteration_bounds = array<i64: 2>, scalar_prefetch = 1 : i64, scratch_operands = 0 : i64, tpu.core_type = #tpu.core_type<tc>, window_params = [{transform_indices = @transform_0, window_bounds = array<i64: 128, 128>}, {transform_indices = @transform_1, window_bounds = array<i64: 1, 128, 256>}, {transform_indices = @transform_2, window_bounds = array<i64: 1, 1, 256>}, {transform_indices = @transform_3, window_bounds = array<i64: 128, 256>}]} {
    %c0 = arith.constant 0 : index
    %c0_0 = arith.constant 0 : index
    %0 = vector.load %arg2[%c0, %c0_0] : memref<128x128xf32, #tpu.memory_space<vmem>>, vector<128x128xf32>
    %1 = arith.truncf %0 : vector<128x128xf32> to vector<128x128xbf16>
    %c0_1 = arith.constant 0 : index
    %c0_2 = arith.constant 0 : index
    %c0_3 = arith.constant 0 : index
    %2 = vector.load %arg3[%c0_1, %c0_2, %c0_3] : memref<1x128x256xbf16, #tpu.memory_space<vmem>>, vector<1x128x256xbf16>
    %3 = vector.shape_cast %2 : vector<1x128x256xbf16> to vector<128x256xbf16>
    %cst = arith.constant dense<0.000000e+00> : vector<128x256xf32>
    %4 = tpu.matmul %1, %3, %cst {dimension_numbers = #tpu.dot_dimension_numbers<[1], [0], [0], [1], [0, 0, 1, 1], [], []>} : vector<128x128xbf16>, vector<128x256xbf16>, vector<128x256xf32> -> vector<128x256xf32>
    %c0_4 = arith.constant 0 : index
    %c0_5 = arith.constant 0 : index
    %c0_6 = arith.constant 0 : index
    %5 = vector.load %arg4[%c0_4, %c0_5, %c0_6] : memref<1x1x256xf32, #tpu.memory_space<vmem>>, vector<1x1x256xf32>
    %6 = vector.shape_cast %5 : vector<1x1x256xf32> to vector<1x256xf32>
    %7 = vector.broadcast %6 : vector<1x256xf32> to vector<128x256xf32>
    %8 = arith.addf %4, %7 : vector<128x256xf32>
    %c0_7 = arith.constant 0 : index
    %c0_8 = arith.constant 0 : index
    %9 = vector.load %arg5[%c0_7, %c0_8] : memref<128x256xf32, #tpu.memory_space<vmem>>, vector<128x256xf32>
    tpu.vector_store %arg5[%c0_7, %c0_8], %8 {strides = array<i32>} : memref<128x256xf32, #tpu.memory_space<vmem>>, vector<128x256xf32>,
    return
  }
  func.func @transform_0(%arg0: i32, %arg1: memref<1xi32, #tpu.memory_space<smem>>) -> (i32, i32) {
    %c0_i32 = arith.constant 0 : i32
    %c0_i32_0 = arith.constant 0 : i32
    return %arg0, %c0_i32 : i32, i32
  }
  func.func @transform_1(%arg0: i32, %arg1: memref<1xi32, #tpu.memory_space<smem>>) -> (i32, i32, i32) {
    %c0 = arith.constant 0 : index
    %0 = memref.load %arg1[%c0] : memref<1xi32, #tpu.memory_space<smem>>
    %c0_i32 = arith.constant 0 : i32
    %c0_i32_0 = arith.constant 0 : i32
    %c0_i32_1 = arith.constant 0 : i32
    return %0, %c0_i32, %c0_i32_0 : i32, i32, i32
  }
  func.func @transform_2(%arg0: i32, %arg1: memref<1xi32, #tpu.memory_space<smem>>) -> (i32, i32, i32) {
    %c0 = arith.constant 0 : index
    %0 = memref.load %arg1[%c0] : memref<1xi32, #tpu.memory_space<smem>>
    %c0_i32 = arith.constant 0 : i32
    %c0_i32_0 = arith.constant 0 : i32
    %c0_i32_1 = arith.constant 0 : i32
    return %0, %c0_i32, %c0_i32_0 : i32, i32, i32
  }
  func.func @transform_3(%arg0: i32, %arg1: memref<1xi32, #tpu.memory_space<smem>>) -> (i32, i32) {
    %c0_i32 = arith.constant 0 : i32
    %c0_i32_0 = arith.constant 0 : i32
    return %arg0, %c0_i32 : i32, i32
  }
}

</mosaic_0001>

<llo_original>
// kernel: _dispatch_linear.1
$region0: #{_dispatch_linear.1}
  #allocation0 [shape = 'u32[]', space=smem, size = 0x4, offset = 0x4, fixed_abs, tag = 'smem constant byte address 0x4 - core index']
  #allocation1 [shape = 'u32[144,128]{1,0:T(1,128)}', space=vmem, size = 0x12000, scoped, tag = 'internal scratch']
  #allocation2 [shape = 's32[1]{0}', space=sflag, size = 0x4, scoped, tag = 'scoped memory for _dispatch_linear.1']
  #allocation3 [shape = 's32[1]{0:T(128)S(6)}', space=smem, size = 0x200, scoped, tag = 'prefetched SMEM operand 0']
  %s0 = inlined_call_operand.<no memory space> [shape: s32[1], index: 0, kind: input, shape index: {}]
  %s1 = inlined_call_operand.hbm [shape: f32[256,128], index: 1, kind: input, shape index: {}]
  %s2 = inlined_call_operand.hbm [shape: bf16[3,128,256], index: 2, kind: input, shape index: {}]
  %s3 = inlined_call_operand.hbm [shape: f32[3,1,256], index: 3, kind: input, shape index: {}]
  %s4 = inlined_call_operand.hbm [shape: f32[256,256], index: 4, kind: output, shape index: {}]
  %s5 = sld [smem:[#allocation0]]
  $region57: #{_dispatch_linear.1} parent=0
    _
  %s7 = ssub.s32 1, %s5
  %s8 = scalar_select 0, %s7, %s5
  %9 = sst [smem:[#allocation3]] %s0
  $region1: #{_dispatch_linear.1} parent=0
    #allocation4 [shape = 'u8[131072]{0}', space=vmem, size = 0x20000, scoped, tag = 'input window, operand 1']
    #allocation5 [shape = 's32[2]{0}', space=sflag, size = 0x8, scoped, tag = 'scoped memory for _dispatch_linear.1']
    #allocation6 [shape = 's32[2]{0}', space=sflag, size = 0x8, scoped, tag = 'scoped memory for _dispatch_linear.1']
    #allocation7 [shape = 'u8[65536]{0}', space=vmem, size = 0x10000, scoped, tag = 'input window, operand 2, single buffered']
    #allocation8 [shape = 's32[1]{0}', space=sflag, size = 0x4, scoped, tag = 'scoped memory for _dispatch_linear.1']
    #allocation9 [shape = 'u8[1024]{0}', space=vmem, size = 0x400, scoped, tag = 'input window, operand 3, single buffered']
    #allocation10 [shape = 'u8[262144]{0}', space=vmem, size = 0x40000, scoped, tag = 'output window, operand 0']
    %10 = vsyncpa [#allocation5], 0
    %s11 = scalar_lea.sflag [#allocation5], 1
    %12 = vsyncpa %s11, 0
    %13 = vsyncpa [#allocation8], 0
    %14 = vsyncpa [#allocation6], 0
    %s15 = scalar_lea.sflag [#allocation6], 1
    %16 = vsyncpa %s15, 0
    loop: start=0, step=1, limit=4
    $region2: #{_dispatch_linear.1} parent=1 // loop_pre_header
      _
    $region3: #{_dispatch_linear.1} parent=1 // loop_header
      %s18 = sphi 0, %s22
      %p19 = scmp.ge.s32.totalorder %s18, 4
      %s28 = sphi 0, %s30
      %s31 = sphi 0, %s28
      %s32 = sphi 0, %s31
      %s48 = sphi 0, %s32
      %s56 = sphi 0, %s58
      %s59 = sphi 0, %s56
      %s60 = sphi 0, %s59
      %s76 = sphi 0, %s60
      %s84 = sphi 0, %s86
      %s87 = sphi 0, %s84
      %s88 = sphi 0, %s87
      %s104 = sphi 0, %s88
      %s110 = sphi 0, %s112
      %s113 = sphi 0, %s110
      %s114 = sphi 0, %s113
      %s130 = sphi 0, %s114
    $region4: #{_dispatch_linear.1} parent=1 // loop_header_branch
      %21 = sbr.rel (%p19) target = $region8
    $region5: #{_dispatch_linear.1} parent=1 // loop_body
      %s23 = ssub.s32 %s18, 1
      %s24 = ssub.s32 %s18, 2
      %s25 = sadd.s32 %s18, 1
      %s26 = ssub.s32 %s18, %s25
      %p27 = scmp.eq.s32.totalorder %s26, 0
      %s29 = sadd.s32 %s28, 1
      %s30 = scalar_select %p27, %s28, %s29
      %p33 = pneg %p27
      %p34 = scmp.eq.s32.totalorder %s18, 1
      %p35 = por %p33, %p34
      %p36 = scmp.ne.s32.totalorder %s28, %s31
      %p37 = scmp.eq.s32.totalorder %s18, 0
      %p38 = por %p36, %p37
      %p39 = scmp.ne.s32.totalorder %s28, %s31
      %p40 = scmp.eq.s32.totalorder %s23, 1
      %p41 = por %p39, %p40
      %p42 = scmp.ne.s32.totalorder %s31, %s32
      %p43 = scmp.eq.s32.totalorder %s23, 0
      %p44 = por %p42, %p43
      %p45 = scmp.ne.s32.totalorder %s31, %s32
      %p46 = scmp.eq.s32.totalorder %s24, 1
      %p47 = por %p45, %p46
      %p49 = scmp.ne.s32.totalorder %s32, %s48
      %p50 = scmp.eq.s32.totalorder %s24, 0
      %p51 = por %p49, %p50
      %s52 = sld [smem:[#allocation3]]
      %s53 = sld [smem:[#allocation3]]
      %s54 = ssub.s32 %s52, %s53
      %p55 = scmp.eq.s32.totalorder %s54, 0
      %s57 = sadd.s32 %s56, 1
      %s58 = scalar_select %p55, %s56, %s57
      %p61 = pneg %p55
      %p62 = scmp.eq.s32.totalorder %s18, 1
      %p63 = por %p61, %p62
      %p64 = scmp.ne.s32.totalorder %s56, %s59
      %p65 = scmp.eq.s32.totalorder %s18, 0
      %p66 = por %p64, %p65
      %p67 = scmp.ne.s32.totalorder %s56, %s59
      %p68 = scmp.eq.s32.totalorder %s23, 1
      %p69 = por %p67, %p68
      %p70 = scmp.ne.s32.totalorder %s59, %s60
      %p71 = scmp.eq.s32.totalorder %s23, 0
      %p72 = por %p70, %p71
      %p73 = scmp.ne.s32.totalorder %s59, %s60
      %p74 = scmp.eq.s32.totalorder %s24, 1
      %p75 = por %p73, %p74
      %p77 = scmp.ne.s32.totalorder %s60, %s76
      %p78 = scmp.eq.s32.totalorder %s24, 0
      %p79 = por %p77, %p78
      %s80 = sld [smem:[#allocation3]]
      %s81 = sld [smem:[#allocation3]]
      %s82 = ssub.s32 %s80, %s81
      %p83 = scmp.eq.s32.totalorder %s82, 0
      %s85 = sadd.s32 %s84, 1
      %s86 = scalar_select %p83, %s84, %s85
      %p89 = pneg %p83
      %p90 = scmp.eq.s32.totalorder %s18, 1
      %p91 = por %p89, %p90
      %p92 = scmp.ne.s32.totalorder %s84, %s87
      %p93 = scmp.eq.s32.totalorder %s18, 0
      %p94 = por %p92, %p93
      %p95 = scmp.ne.s32.totalorder %s84, %s87
      %p96 = scmp.eq.s32.totalorder %s23, 1
      %p97 = por %p95, %p96
      %p98 = scmp.ne.s32.totalorder %s87, %s88
      %p99 = scmp.eq.s32.totalorder %s23, 0
      %p100 = por %p98, %p99
      %p101 = scmp.ne.s32.totalorder %s87, %s88
      %p102 = scmp.eq.s32.totalorder %s24, 1
      %p103 = por %p101, %p102
      %p105 = scmp.ne.s32.totalorder %s88, %s104
      %p106 = scmp.eq.s32.totalorder %s24, 0
      %p107 = por %p105, %p106
      %s108 = ssub.s32 %s18, %s25
      %p109 = scmp.eq.s32.totalorder %s108, 0
      %s111 = sadd.s32 %s110, 1
      %s112 = scalar_select %p109, %s110, %s111
      %p115 = pneg %p109
      %p116 = scmp.eq.s32.totalorder %s18, 1
      %p117 = por %p115, %p116
      %p118 = scmp.ne.s32.totalorder %s110, %s113
      %p119 = scmp.eq.s32.totalorder %s18, 0
      %p120 = por %p118, %p119
      %p121 = scmp.ne.s32.totalorder %s110, %s113
      %p122 = scmp.eq.s32.totalorder %s23, 1
      %p123 = por %p121, %p122
      %p124 = scmp.ne.s32.totalorder %s113, %s114
      %p125 = scmp.eq.s32.totalorder %s23, 0
      %p126 = por %p124, %p125
      %p127 = scmp.ne.s32.totalorder %s113, %s114
      %p128 = scmp.eq.s32.totalorder %s24, 1
      %p129 = por %p127, %p128
      %p131 = scmp.ne.s32.totalorder %s114, %s130
      %p132 = scmp.eq.s32.totalorder %s24, 0
      %p133 = por %p131, %p132
      %p134 = scmp.le.s32.totalorder 1, %s18
      %p135 = scmp.lt.s32.totalorder %s18, 3
      %p136 = pnand %p134, %p135
      %p137 = pneg %p136
      // Predicated region
      $region9: #{_dispatch_linear.1} parent=5 // pred_check
        _
      $region10: #{_dispatch_linear.1} parent=5 // pred_check_branch
        %139 = sbr.rel (%p136) target = $region12
      $region11: #{_dispatch_linear.1} parent=5 // pred_region
        %s140 = ssub.s32 %s18, 1
        // Predicated region
        $region13: #{_dispatch_linear.1} parent=11 // pred_check
          %p141 = pneg %p72
        $region14: #{_dispatch_linear.1} parent=11 // pred_check_branch
          %143 = sbr.rel (%p141) target = $region16
        $region15: #{_dispatch_linear.1} parent=11 // pred_region
          %s144 = sld [smem:[#allocation3]]
          %s146 = ssub.s32 2048, 2048
          %147 = vsyncadd [#allocation8], %s146
          %s148 = smul.addr %s144, 32
          %s149 = smul.addr %s148, 64
          %s150 = scalar_lea.hbm %s2, %s149
          %s151 = sshll.u32 [#allocation7], 4
          %s152 = int_to_ptr.vmem [resolvable:$true] %s151
          %157 = dma.hbm_to_vmem [thread:$0]  %s150, 2048, %s152, [#allocation8], 128, 128, 8
        $region16: #{_dispatch_linear.1} parent=11 // pred_fallthru
          _
        // Predicated region
        $region17: #{_dispatch_linear.1} parent=11 // pred_check
          %p158 = pneg %p100
        $region18: #{_dispatch_linear.1} parent=11 // pred_check_branch
          %160 = sbr.rel (%p158) target = $region20
        $region19: #{_dispatch_linear.1} parent=11 // pred_region
          %s161 = sld [smem:[#allocation3]]
          %s163 = ssub.s32 32, 32
          %164 = vsyncadd [#allocation8], %s163
          %s165 = smul.addr %s161, 2
          %s166 = smul.addr %s165, 16
          %s167 = scalar_lea.hbm %s3, %s166
          %s169 = sshll.u32 [#allocation9], 4
          %s170 = int_to_ptr.vmem [resolvable:$true] %s169
          %172 = dma.hbm_to_vmem [thread:$0]  %s167, 32, %s170, [#allocation8]
        $region20: #{_dispatch_linear.1} parent=11 // pred_fallthru
          _
      $region12: #{_dispatch_linear.1} parent=5 // pred_fallthru
        _
      %p173 = scmp.lt.s32.totalorder %s18, 2
      // Predicated region
      $region21: #{_dispatch_linear.1} parent=5 // pred_check
        %p174 = pneg %p173
      $region22: #{_dispatch_linear.1} parent=5 // pred_check_branch
        %176 = sbr.rel (%p174) target = $region24
      $region23: #{_dispatch_linear.1} parent=5 // pred_region
        // Predicated region
        $region25: #{_dispatch_linear.1} parent=23 // pred_check
          %p177 = pneg %p38
        $region26: #{_dispatch_linear.1} parent=23 // pred_check_branch
          %179 = sbr.rel (%p177) target = $region28
        $region27: #{_dispatch_linear.1} parent=23 // pred_region
          %s180 = sand.u32 %s28, 1
          %s181 = scalar_lea.sflag [#allocation5], %s180
          %s182 = sand.u32 %s28, 1
          %s183 = smul.addr %s182, 128
          %s184 = scalar_lea.vmem [#allocation4], %s183
          %s185 = smul.u32 16, %s18
          %s187 = ssub.s32 2048, 2048
          %188 = vsyncadd %s181, %s187
          %s189 = smul.addr %s185, 128
          %s190 = scalar_lea.hbm %s1, %s189
          %s191 = sshll.u32 %s184, 4
          %s192 = int_to_ptr.vmem [resolvable:$true] %s191
          %197 = dma.hbm_to_vmem [thread:$0]  %s190, 2048, %s192, %s181, 128, 128, 8
        $region28: #{_dispatch_linear.1} parent=23 // pred_fallthru
          _
      $region24: #{_dispatch_linear.1} parent=5 // pred_fallthru
        _
      %p198 = scmp.le.s32.totalorder 1, %s18
      %p199 = scmp.lt.s32.totalorder %s18, 3
      %p200 = pnand %p198, %p199
      %p201 = pneg %p200
      // Predicated region
      $region29: #{_dispatch_linear.1} parent=5 // pred_check
        _
      $region30: #{_dispatch_linear.1} parent=5 // pred_check_branch
        %203 = sbr.rel (%p200) target = $region32
      $region31: #{_dispatch_linear.1} parent=5 // pred_region
        %s204 = ssub.s32 %s18, 1
        %s205 = sand.u32 %s31, 1
        %s206 = scalar_lea.sflag [#allocation5], %s205
        %s207 = sand.u32 %s31, 1
        %s208 = smul.addr %s207, 128
        %s209 = scalar_lea.vmem [#allocation4], %s208
        // Predicated region
        $region33: #{_dispatch_linear.1} parent=31 // pred_check
          %p210 = pneg %p44
        $region34: #{_dispatch_linear.1} parent=31 // pred_check_branch
          %212 = sbr.rel (%p210) target = $region36
        $region35: #{_dispatch_linear.1} parent=31 // pred_region
          %213 = dma.done %s206, 2048
        $region36: #{_dispatch_linear.1} parent=31 // pred_fallthru
          _
        // Predicated region
        $region37: #{_dispatch_linear.1} parent=31 // pred_check
          %p214 = pneg %p72
        $region38: #{_dispatch_linear.1} parent=31 // pred_check_branch
          %216 = sbr.rel (%p214) target = $region40
        $region39: #{_dispatch_linear.1} parent=31 // pred_region
          %217 = dma.done [#allocation8], 2048
        $region40: #{_dispatch_linear.1} parent=31 // pred_fallthru
          _
        // Predicated region
        $region41: #{_dispatch_linear.1} parent=31 // pred_check
          %p218 = pneg %p100
        $region42: #{_dispatch_linear.1} parent=31 // pred_check_branch
          %220 = sbr.rel (%p218) target = $region44
        $region43: #{_dispatch_linear.1} parent=31 // pred_region
          %221 = dma.done [#allocation8], 32
        $region44: #{_dispatch_linear.1} parent=31 // pred_fallthru
          _
        %s222 = sand.u32 %s31, 1
        %s223 = scalar_lea.sflag [#allocation5], %s222
        %s224 = sand.u32 %s31, 1
        %s225 = smul.addr %s224, 128
        %s226 = scalar_lea.vmem [#allocation4], %s225
        %p227 = pneg %p44
        %p228 = pneg %p41
        %p229 = pneg %p72
        %p230 = pneg %p69
        %p231 = pneg %p100
        %p232 = pneg %p97
        %p233 = pneg %p126
        %p234 = pneg %p123
        %s235 = sand.u32 %s113, 1
        %s236 = scalar_lea.sflag [#allocation6], %s235
        %s237 = sand.u32 %s113, 1
        %s238 = smul.addr %s237, 256
        %s239 = scalar_lea.vmem [#allocation10], %s238
        %s240 = smul.u32 16, %s23
        %s241 = sld [smem:[#allocation3]]
        %s242 = sld [smem:[#allocation3]]
        %s243 = smul.u32 16, %s23
        %v245 = vld [vmem:[%s209] sm:$0xff]
        %v246 = vld [vmem:[%s209 + $0x8] sm:$0xff]
        %v247 = vld [vmem:[%s209 + $0x10] sm:$0xff]
        %v248 = vld [vmem:[%s209 + $0x18] sm:$0xff]
        %v249 = vld [vmem:[%s209 + $0x20] sm:$0xff]
        %v250 = vld [vmem:[%s209 + $0x28] sm:$0xff]
        %v251 = vld [vmem:[%s209 + $0x30] sm:$0xff]
        %v252 = vld [vmem:[%s209 + $0x38] sm:$0xff]
        %v253 = vld [vmem:[%s209 + $0x40] sm:$0xff]
        %v254 = vld [vmem:[%s209 + $0x48] sm:$0xff]
        %v255 = vld [vmem:[%s209 + $0x50] sm:$0xff]
        %v256 = vld [vmem:[%s209 + $0x58] sm:$0xff]
        %v257 = vld [vmem:[%s209 + $0x60] sm:$0xff]
        %v258 = vld [vmem:[%s209 + $0x68] sm:$0xff]
        %v259 = vld [vmem:[%s209 + $0x70] sm:$0xff]
        %v260 = vld [vmem:[%s209 + $0x78] sm:$0xff]
        %v261 = vpack.c.bf16 %v246, %v245
        %v262 = vpack.c.bf16 %v248, %v247
        %v263 = vpack.c.bf16 %v250, %v249
        %v264 = vpack.c.bf16 %v252, %v251
        %v265 = vpack.c.bf16 %v254, %v253
        %v266 = vpack.c.bf16 %v256, %v255
        %v267 = vpack.c.bf16 %v258, %v257
        %v268 = vpack.c.bf16 %v260, %v259
        %v269 = vld [vmem:[#allocation7] sm:$0xff]
        %v270 = vld [vmem:[#allocation7 + $0x8] sm:$0xff]
        %v271 = vld [vmem:[#allocation7 + $0x10] sm:$0xff]
        %v272 = vld [vmem:[#allocation7 + $0x18] sm:$0xff]
        %v273 = vld [vmem:[#allocation7 + $0x20] sm:$0xff]
        %v274 = vld [vmem:[#allocation7 + $0x28] sm:$0xff]
        %v275 = vld [vmem:[#allocation7 + $0x30] sm:$0xff]
        %v276 = vld [vmem:[#allocation7 + $0x38] sm:$0xff]
        %v277 = vld [vmem:[#allocation7 + $0x40] sm:$0xff]
        %v278 = vld [vmem:[#allocation7 + $0x48] sm:$0xff]
        %v279 = vld [vmem:[#allocation7 + $0x50] sm:$0xff]
        %v280 = vld [vmem:[#allocation7 + $0x58] sm:$0xff]
        %v281 = vld [vmem:[#allocation7 + $0x60] sm:$0xff]
        %v282 = vld [vmem:[#allocation7 + $0x68] sm:$0xff]
        %v283 = vld [vmem:[#allocation7 + $0x70] sm:$0xff]
        %v284 = vld [vmem:[#allocation7 + $0x78] sm:$0xff]
        %v285 = vld [vmem:[#allocation9] sm:$0x3]
        %v287 = vlaneseq
        %v288 = vshrl.u32 %v287, 7
        %v289 = vsub.s32 0, %v288
        %v290 = vrot.slane %v285, %v289
        %v291 = vlaneseq
        %v292 = vshrl.u32 %v291, 7
        %v293 = vsub.s32 1, %v292
        %v294 = vrot.slane %v285, %v293
        %v313 = vunpack.c.l.b16 %v269
        %v314 = vunpack.c.h.b16 %v269
        %v315 = vunpack.c.l.b16 %v270
        %v316 = vunpack.c.h.b16 %v270
        %v317 = vunpack.c.l.b16 %v271
        %v318 = vunpack.c.h.b16 %v271
        %v319 = vunpack.c.l.b16 %v272
        %v320 = vunpack.c.h.b16 %v272
        %v321 = vunpack.c.l.b16 %v273
        %v322 = vunpack.c.h.b16 %v273
        %v323 = vunpack.c.l.b16 %v274
        %v324 = vunpack.c.h.b16 %v274
        %v325 = vunpack.c.l.b16 %v275
        %v326 = vunpack.c.h.b16 %v275
        %v327 = vunpack.c.l.b16 %v276
        %v328 = vunpack.c.h.b16 %v276
        %v329 = vunpack.c.l.b16 %v277
        %v330 = vunpack.c.h.b16 %v277
        %v331 = vunpack.c.l.b16 %v278
        %v332 = vunpack.c.h.b16 %v278
        %v333 = vunpack.c.l.b16 %v279
        %v334 = vunpack.c.h.b16 %v279
        %v335 = vunpack.c.l.b16 %v280
        %v336 = vunpack.c.h.b16 %v280
        %v337 = vunpack.c.l.b16 %v281
        %v338 = vunpack.c.h.b16 %v281
        %v339 = vunpack.c.l.b16 %v282
        %v340 = vunpack.c.h.b16 %v282
        %v341 = vunpack.c.l.b16 %v283
        %v342 = vunpack.c.h.b16 %v283
        %v343 = vunpack.c.l.b16 %v284
        %v344 = vunpack.c.h.b16 %v284
        %v345 = vpack.c.b16 %v315, %v313
        %v346 = vpack.c.b16 %v316, %v314
        %v347 = vpack.c.b16 %v319, %v317
        %v348 = vpack.c.b16 %v320, %v318
        %v349 = vpack.c.b16 %v323, %v321
        %v350 = vpack.c.b16 %v324, %v322
        %v351 = vpack.c.b16 %v327, %v325
        %v352 = vpack.c.b16 %v328, %v326
        %v353 = vpack.c.b16 %v331, %v329
        %v354 = vpack.c.b16 %v332, %v330
        %v355 = vpack.c.b16 %v335, %v333
        %v356 = vpack.c.b16 %v336, %v334
        %v357 = vpack.c.b16 %v339, %v337
        %v358 = vpack.c.b16 %v340, %v338
        %v359 = vpack.c.b16 %v343, %v341
        %v360 = vpack.c.b16 %v344, %v342
        %377 = vmatprep.subr.bf16.mxu0 %v360
        %378 = vmatpush1.bf16.msra.mxu0 %v359
        %379 = vmatprep.subr.bf16.mxu0 %v358
        %380 = vmatpush1.bf16.msra.mxu0 %v357
        %381 = vmatprep.subr.bf16.mxu0 %v356
        %382 = vmatpush1.bf16.msra.mxu0 %v355
        %383 = vmatprep.subr.bf16.mxu0 %v354
        %384 = vmatpush1.bf16.msra.mxu0 %v353
        %385 = vmatprep.subr.bf16.mxu0 %v352
        %386 = vmatpush1.bf16.msra.mxu0 %v351
        %387 = vmatprep.subr.bf16.mxu0 %v350
        %388 = vmatpush1.bf16.msra.mxu0 %v349
        %389 = vmatprep.subr.bf16.mxu0 %v348
        %390 = vmatpush1.bf16.msra.mxu0 %v347
        %391 = vmatprep.subr.bf16.mxu0 %v346
        %392 = vmatpush1.bf16.msra.mxu0 %v345
        %393 = vmatprep.subr.bf16.mxu0 0
        %394 = vmatpush2.bf16.msra.mxu0 0
        %395 = vmatprep.subr.bf16.mxu0 0
        %396 = vmatpush2.bf16.msra.mxu0 0
        %397 = vmatprep.subr.bf16.mxu0 0
        %398 = vmatpush2.bf16.msra.mxu0 0
        %399 = vmatprep.subr.bf16.mxu0 0
        %400 = vmatpush2.bf16.msra.mxu0 0
        %401 = vmatprep.subr.bf16.mxu0 0
        %402 = vmatpush2.bf16.msra.mxu0 0
        %403 = vmatprep.subr.bf16.mxu0 0
        %404 = vmatpush2.bf16.msra.mxu0 0
        %405 = vmatprep.subr.bf16.mxu0 0
        %406 = vmatpush2.bf16.msra.mxu0 0
        %407 = vmatprep.subr.bf16.mxu0 0
        %408 = vmatpush2.bf16.msra.mxu0 0
        %409 = vmatprep.mubr.bf16.mxu0 0
        %410 = vmatmul.mubr.bf16.gmra.mxu0 %v261
        %v411 = vpop.f32.mrf.mxu0
        %v412 = vadd.f32 %v290, %v411
        %v413 = vpop.f32.mrf.mxu0
        %v414 = vadd.f32 %v294, %v413
        %v415 = vpop.f32.mrf.mxu0
        %v416 = vadd.f32 %v290, %v415
        %v417 = vpop.f32.mrf.mxu0
        %v418 = vadd.f32 %v294, %v417
        %419 = vmatprep.mubr.bf16.mxu0 0
        %420 = vmatmul.mubr.bf16.gmra.mxu0 %v262
        %v421 = vpop.f32.mrf.mxu0
        %v422 = vadd.f32 %v290, %v421
        %v423 = vpop.f32.mrf.mxu0
        %v424 = vadd.f32 %v294, %v423
        %v425 = vpop.f32.mrf.mxu0
        %v426 = vadd.f32 %v290, %v425
        %v427 = vpop.f32.mrf.mxu0
        %v428 = vadd.f32 %v294, %v427
        %429 = vmatprep.mubr.bf16.mxu0 0
        %430 = vmatmul.mubr.bf16.gmra.mxu0 %v263
        %v431 = vpop.f32.mrf.mxu0
        %v432 = vadd.f32 %v290, %v431
        %v433 = vpop.f32.mrf.mxu0
        %v434 = vadd.f32 %v294, %v433
        %v435 = vpop.f32.mrf.mxu0
        %v436 = vadd.f32 %v290, %v435
        %v437 = vpop.f32.mrf.mxu0
        %v438 = vadd.f32 %v294, %v437
        %439 = vmatprep.mubr.bf16.mxu0 0
        %440 = vmatmul.mubr.bf16.gmra.mxu0 %v264
        %v441 = vpop.f32.mrf.mxu0
        %v442 = vadd.f32 %v290, %v441
        %v443 = vpop.f32.mrf.mxu0
        %v444 = vadd.f32 %v294, %v443
        %v445 = vpop.f32.mrf.mxu0
        %v446 = vadd.f32 %v290, %v445
        %v447 = vpop.f32.mrf.mxu0
        %v448 = vadd.f32 %v294, %v447
        %449 = vmatprep.mubr.bf16.mxu0 0
        %450 = vmatmul.mubr.bf16.gmra.mxu0 %v265
        %v451 = vpop.f32.mrf.mxu0
        %v452 = vadd.f32 %v290, %v451
        %v453 = vpop.f32.mrf.mxu0
        %v454 = vadd.f32 %v294, %v453
        %v455 = vpop.f32.mrf.mxu0
        %v456 = vadd.f32 %v290, %v455
        %v457 = vpop.f32.mrf.mxu0
        %v458 = vadd.f32 %v294, %v457
        %459 = vmatprep.mubr.bf16.mxu0 0
        %460 = vmatmul.mubr.bf16.gmra.mxu0 %v266
        %v461 = vpop.f32.mrf.mxu0
        %v462 = vadd.f32 %v290, %v461
        %v463 = vpop.f32.mrf.mxu0
        %v464 = vadd.f32 %v294, %v463
        %v465 = vpop.f32.mrf.mxu0
        %v466 = vadd.f32 %v290, %v465
        %v467 = vpop.f32.mrf.mxu0
        %v468 = vadd.f32 %v294, %v467
        %469 = vmatprep.mubr.bf16.mxu0 0
        %470 = vmatmul.mubr.bf16.gmra.mxu0 %v267
        %v471 = vpop.f32.mrf.mxu0
        %v472 = vadd.f32 %v290, %v471
        %v473 = vpop.f32.mrf.mxu0
        %v474 = vadd.f32 %v294, %v473
        %v475 = vpop.f32.mrf.mxu0
        %v476 = vadd.f32 %v290, %v475
        %v477 = vpop.f32.mrf.mxu0
        %v478 = vadd.f32 %v294, %v477
        %479 = vmatprep.mubr.bf16.mxu0 0
        %480 = vmatmul.mubr.bf16.gmra.mxu0 %v268
        %v481 = vpop.f32.mrf.mxu0
        %v482 = vadd.f32 %v290, %v481
        %v483 = vpop.f32.mrf.mxu0
        %v484 = vadd.f32 %v294, %v483
        %v485 = vpop.f32.mrf.mxu0
        %v486 = vadd.f32 %v290, %v485
        %v487 = vpop.f32.mrf.mxu0
        %v488 = vadd.f32 %v294, %v487
        %489 = vdwg.mxu0
        %490 = vst [vmem:[%s239] sm:$0xff] %v412
        %491 = vst [vmem:[%s239 + $0x8] sm:$0xff] %v414
        %492 = vst [vmem:[%s239 + $0x10] sm:$0xff] %v416
        %493 = vst [vmem:[%s239 + $0x18] sm:$0xff] %v418
        %494 = vst [vmem:[%s239 + $0x20] sm:$0xff] %v422
        %495 = vst [vmem:[%s239 + $0x28] sm:$0xff] %v424
        %496 = vst [vmem:[%s239 + $0x30] sm:$0xff] %v426
        %497 = vst [vmem:[%s239 + $0x38] sm:$0xff] %v428
        %498 = vst [vmem:[%s239 + $0x40] sm:$0xff] %v432
        %499 = vst [vmem:[%s239 + $0x48] sm:$0xff] %v434
        %500 = vst [vmem:[%s239 + $0x50] sm:$0xff] %v436
        %501 = vst [vmem:[%s239 + $0x58] sm:$0xff] %v438
        %502 = vst [vmem:[%s239 + $0x60] sm:$0xff] %v442
        %503 = vst [vmem:[%s239 + $0x68] sm:$0xff] %v444
        %504 = vst [vmem:[%s239 + $0x70] sm:$0xff] %v446
        %505 = vst [vmem:[%s239 + $0x78] sm:$0xff] %v448
        %506 = vst [vmem:[%s239 + $0x80] sm:$0xff] %v452
        %507 = vst [vmem:[%s239 + $0x88] sm:$0xff] %v454
        %508 = vst [vmem:[%s239 + $0x90] sm:$0xff] %v456
        %509 = vst [vmem:[%s239 + $0x98] sm:$0xff] %v458
        %510 = vst [vmem:[%s239 + $0xa0] sm:$0xff] %v462
        %511 = vst [vmem:[%s239 + $0xa8] sm:$0xff] %v464
        %512 = vst [vmem:[%s239 + $0xb0] sm:$0xff] %v466
        %513 = vst [vmem:[%s239 + $0xb8] sm:$0xff] %v468
        %514 = vst [vmem:[%s239 + $0xc0] sm:$0xff] %v472
        %515 = vst [vmem:[%s239 + $0xc8] sm:$0xff] %v474
        %516 = vst [vmem:[%s239 + $0xd0] sm:$0xff] %v476
        %517 = vst [vmem:[%s239 + $0xd8] sm:$0xff] %v478
        %518 = vst [vmem:[%s239 + $0xe0] sm:$0xff] %v482
        %519 = vst [vmem:[%s239 + $0xe8] sm:$0xff] %v484
        %520 = vst [vmem:[%s239 + $0xf0] sm:$0xff] %v486
        %521 = vst [vmem:[%s239 + $0xf8] sm:$0xff] %v488
        %s522 = sand.u32 %s113, 1
        %s523 = scalar_lea.sflag [#allocation6], %s522
        %s524 = sand.u32 %s113, 1
        %s525 = smul.addr %s524, 256
        %s526 = scalar_lea.vmem [#allocation10], %s525
        // Predicated region
        $region45: #{_dispatch_linear.1} parent=31 // pred_check
          %p527 = pneg %p123
        $region46: #{_dispatch_linear.1} parent=31 // pred_check_branch
          %529 = sbr.rel (%p527) target = $region48
        $region47: #{_dispatch_linear.1} parent=31 // pred_region
          %s530 = smul.u32 16, %s23
          %s532 = ssub.s32 4096, 4096
          %533 = vsyncadd %s523, %s532
          %s534 = smul.addr %s530, 2
          %s535 = smul.addr %s534, 128
          %s536 = scalar_lea.hbm %s4, %s535
          %s537 = sshll.u32 %s526, 4
          %s538 = int_to_ptr.vmem [resolvable:$true] %s537
          %543 = dma.vmem_to_hbm [thread:$0]  %s538, 4096, %s536, %s523, 256, 256, 16
        $region48: #{_dispatch_linear.1} parent=31 // pred_fallthru
          _
      $region32: #{_dispatch_linear.1} parent=5 // pred_fallthru
        _
      %p544 = scmp.le.s32.totalorder 2, %s18
      // Predicated region
      $region49: #{_dispatch_linear.1} parent=5 // pred_check
        %p545 = pneg %p544
      $region50: #{_dispatch_linear.1} parent=5 // pred_check_branch
        %547 = sbr.rel (%p545) target = $region52
      $region51: #{_dispatch_linear.1} parent=5 // pred_region
        %s548 = ssub.s32 %s18, 2
        // Predicated region
        $region53: #{_dispatch_linear.1} parent=51 // pred_check
          %p549 = pneg %p129
        $region54: #{_dispatch_linear.1} parent=51 // pred_check_branch
          %551 = sbr.rel (%p549) target = $region56
        $region55: #{_dispatch_linear.1} parent=51 // pred_region
          %s552 = sand.u32 %s114, 1
          %s553 = scalar_lea.sflag [#allocation6], %s552
          %s554 = sand.u32 %s114, 1
          %s555 = smul.addr %s554, 256
          %s556 = scalar_lea.vmem [#allocation10], %s555
          %557 = dma.done %s553, 4096
        $region56: #{_dispatch_linear.1} parent=51 // pred_fallthru
          _
      $region52: #{_dispatch_linear.1} parent=5 // pred_fallthru
        _
    $region6: #{_dispatch_linear.1} parent=1 // loop_footer
      %s22 = sadd.s32 1, %s18
    $region7: #{_dispatch_linear.1} parent=1 // loop_footer_branch
      %17 = sbr.rel target = $region3
    $region8: #{_dispatch_linear.1} parent=1 // loop_exit
      _
    %558 = vsyncpa [#allocation5], 1
    %s559 = scalar_lea.sflag [#allocation5], 1
    %560 = vsyncpa %s559, 1
    %561 = vsyncpa [#allocation8], 1
    %562 = vsyncpa [#allocation6], 1
    %s563 = scalar_lea.sflag [#allocation6], 1
    %564 = vsyncpa %s563, 1

</llo_original>
